<compile_context>
chip_gen: v7x
topology: tpu7x:2x2x1
jax: 0.10.0
libtpu: 0.0.40
codegen_flags: <defaults>
</compile_context>

<pallas_src>
import math

import jax
import jax.numpy as jnp
from jax.experimental import pallas as pl
from jax.experimental.pallas import tpu as pltpu


def _external_attn_kernel(x_ref, wk_ref, wv_ref, o_ref):
    """x_ref: (Bt, N, D) f32; wk_ref: (D, S) bf16; wv_ref: (S, D) bf16; o_ref: (Bt, N, D)."""
    bt, n, d = x_ref.shape
    s_ext = wk_ref.shape[1]

    # Flatten batch*time so the MXU sees M = Bt*N rows; bf16 only at the MXU input.
    x2d = x_ref[...].reshape(bt * n, d).astype(jnp.bfloat16)

    # attn logits = queries @ mk.weight.T  (weights pre-transposed -> plain dot, f32 acc)
    logits = jnp.dot(x2d, wk_ref[...], preferred_element_type=jnp.float32)
    logits = logits.reshape(bt, n, s_ext)

    # Numerically-stable softmax over dim=1 (the temporal axis), all in f32.
    m = jnp.max(logits, axis=1, keepdims=True)
    p = jnp.exp(logits - m)
    denom = jnp.sum(p, axis=1, keepdims=True)
    p = p * pl.reciprocal(denom, approx=True)          # EUP vrcp: off the VALU/XLU path

    # out = attn @ mv.weight.T
    out = jnp.dot(p.reshape(bt * n, s_ext).astype(jnp.bfloat16), wv_ref[...],
                  preferred_element_type=jnp.float32)
    o_ref[...] = out.reshape(bt, n, d).astype(o_ref.dtype)


def _pick_batch_tile(b, n, target_rows=512):
    """Largest batch tile that keeps Bt*N modest and >= 2 grid steps when possible."""
    divisors = [c for c in range(1, b + 1) if b % c == 0]
    fitting = [c for c in divisors if c * n <= target_rows] or [1]
    multi_step = [c for c in fitting if b // c >= 2]
    return max(multi_step) if multi_step else max(fitting)


def _vmem_limit_bytes(bt, n, d, s_ext):
    weights = 2 * d * s_ext * 2                      # mk + mv in bf16 (single-buffered)
    acts = 2 * (bt * n * d * 4) * 2                  # x + out tiles, double-buffered, f32
    inter = 6 * bt * n * s_ext * 4                   # logits / exp / prob temporaries, f32
    total = weights + acts + inter
    return int(min(max(2 * total, 8 * 1024 * 1024), 64 * 1024 * 1024))


def _build_call(b, n, d, s_ext, bt, out_dtype, single_buffer_weights):
    grid = (b // bt,)

    x_spec = pl.BlockSpec((bt, n, d), lambda i: (i, 0, 0))
    o_spec = pl.BlockSpec((bt, n, d), lambda i: (i, 0, 0))
    if single_buffer_weights:
        wk_spec = pl.BlockSpec((d, s_ext), lambda i: (0, 0), pipeline_mode=pl.Buffered(1))
        wv_spec = pl.BlockSpec((s_ext, d), lambda i: (0, 0), pipeline_mode=pl.Buffered(1))
    else:
        wk_spec = pl.BlockSpec((d, s_ext), lambda i: (0, 0))
        wv_spec = pl.BlockSpec((s_ext, d), lambda i: (0, 0))

    return pl.pallas_call(
        _external_attn_kernel,
        out_shape=jax.ShapeDtypeStruct((b, n, d), out_dtype),
        grid_spec=pltpu.PrefetchScalarGridSpec(
            num_scalar_prefetch=0,
            grid=grid,
            in_specs=[x_spec, wk_spec, wv_spec],
            out_specs=o_spec,
        ),
        compiler_params=pltpu.CompilerParams(
            dimension_semantics=("parallel",),
            vmem_limit_bytes=_vmem_limit_bytes(bt, n, d, s_ext),
        ),
    )


def temporal_external_attn(queries, mk_weight, mv_weight, *, block_b=None):
    """TemporalExternalAttn.forward.

    queries:   (B, N, d_model) float32
    mk_weight: (S, d_model)  -- PyTorch nn.Linear(d_model, S).weight layout
    mv_weight: (d_model, S)  -- PyTorch nn.Linear(S, d_model).weight layout
    """
    b, n, d = queries.shape
    s_ext = mk_weight.shape[0]
    assert mk_weight.shape == (s_ext, d)
    assert mv_weight.shape == (d, s_ext)

    bt = block_b if block_b is not None else _pick_batch_tile(b, n)
    assert b % bt == 0

    # Host-side prep (precompute once in deployment): transpose to kernel layout so
    # no transpose happens on-chip, and cast weights to bf16 (halves DMA + VMEM).
    wk_t = jnp.transpose(mk_weight).astype(jnp.bfloat16)   # (D, S)
    wv_t = jnp.transpose(mv_weight).astype(jnp.bfloat16)   # (S, D)

    last_err = None
    for single_buffer in (True, False):
        try:
            call = _build_call(b, n, d, s_ext, bt, queries.dtype, single_buffer)
            return call(queries, wk_t, wv_t)
        except Exception as err:
            # Some jax versions may reject pipeline_mode=pl.Buffered(1); retry with
            # default (double-buffered) weight specs -- correctness is unaffected.
            last_err = err
    raise last_err


def _reference(queries, mk_weight, mv_weight):
    """Pure-JAX mirror of the PyTorch forward, with the same bf16 operand casts."""
    logits = jnp.einsum("bnd,sd->bns",
                        queries.astype(jnp.bfloat16), mk_weight.astype(jnp.bfloat16),
                        preferred_element_type=jnp.float32)
    p = jax.nn.softmax(logits, axis=1)
    return jnp.einsum("bns,ds->bnd",
                      p.astype(jnp.bfloat16), mv_weight.astype(jnp.bfloat16),
                      preferred_element_type=jnp.float32)


if __name__ == "__main__":
    # Small, lane-aligned demo shapes: batch=4, seq=16, d_model=128, S (memory)=256.
    B, N, D_MODEL, S_EXT = 4, 16, 128, 256

    key = jax.random.PRNGKey(0)
    kx, kmk, kmv = jax.random.split(key, 3)

    queries = jax.random.normal(kx, (B, N, D_MODEL), jnp.float32)
    # PyTorch nn.Linear layout: weight is (out_features, in_features).
    mk_w = jax.random.normal(kmk, (S_EXT, D_MODEL), jnp.float32) / math.sqrt(D_MODEL)
    mv_w = jax.random.normal(kmv, (D_MODEL, S_EXT), jnp.float32) / math.sqrt(S_EXT)

    out = temporal_external_attn(queries, mk_w, mv_w)
    out = jax.block_until_ready(out)

    ref = _reference(queries, mk_w, mv_w)
    assert out.shape == (B, N, D_MODEL)
    assert bool(jnp.all(jnp.isfinite(out)))
    assert bool(jnp.allclose(out, ref, atol=2e-2, rtol=2e-2)), \
        float(jnp.max(jnp.abs(out - ref)))
    print("KERNEL_OK")
</pallas_src>

<mosaic_0001>
module attributes {stable_mosaic.version = 11 : i64} {
  func.func @_external_attn_kernel(%arg0: i32, %arg1: memref<2x16x128xf32, #tpu.memory_space<vmem>>, %arg2: memref<128x256xbf16, #tpu.memory_space<vmem>>, %arg3: memref<256x128xbf16, #tpu.memory_space<vmem>>, %arg4: memref<2x16x128xf32, #tpu.memory_space<vmem>>) attributes {dimension_semantics = [#tpu.dimension_semantics<parallel>], iteration_bounds = array<i64: 2>, scalar_prefetch = 0 : i64, scratch_operands = 0 : i64, tpu.core_type = #tpu.core_type<tc>, window_params = [{transform_indices = @transform_0, window_bounds = array<i64: 2, 16, 128>}, {pipeline_mode = #tpu.pipeline_mode<synchronous>, transform_indices = @transform_1, window_bounds = array<i64: 128, 256>}, {pipeline_mode = #tpu.pipeline_mode<synchronous>, transform_indices = @transform_2, window_bounds = array<i64: 256, 128>}, {transform_indices = @transform_3, window_bounds = array<i64: 2, 16, 128>}]} {
    %c0 = arith.constant 0 : index
    %c0_0 = arith.constant 0 : index
    %c0_1 = arith.constant 0 : index
    %0 = vector.load %arg1[%c0, %c0_0, %c0_1] : memref<2x16x128xf32, #tpu.memory_space<vmem>>, vector<2x16x128xf32>
    %1 = vector.shape_cast %0 : vector<2x16x128xf32> to vector<32x128xf32>
    %2 = arith.truncf %1 : vector<32x128xf32> to vector<32x128xbf16>
    %c0_2 = arith.constant 0 : index
    %c0_3 = arith.constant 0 : index
    %3 = vector.load %arg2[%c0_2, %c0_3] : memref<128x256xbf16, #tpu.memory_space<vmem>>, vector<128x256xbf16>
    %cst = arith.constant dense<0.000000e+00> : vector<32x256xf32>
    %4 = tpu.matmul %2, %3, %cst {dimension_numbers = #tpu.dot_dimension_numbers<[1], [0], [0], [1], [0, 0, 1, 1], [], []>} : vector<32x128xbf16>, vector<128x256xbf16>, vector<32x256xf32> -> vector<32x256xf32>
    %5 = vector.shape_cast %4 : vector<32x256xf32> to vector<2x16x256xf32>
    %cst_4 = arith.constant dense<0xFF800000> : vector<2x256xf32>
    %6 = vector.multi_reduction <maximumf>, %5, %cst_4 [1] : vector<2x16x256xf32> to vector<2x256xf32>
    %7 = vector.shape_cast %6 : vector<2x256xf32> to vector<2x1x256xf32>
    %8 = vector.broadcast %7 : vector<2x1x256xf32> to vector<2x16x256xf32>
    %9 = arith.subf %5, %8 : vector<2x16x256xf32>
    %10 = math.exp %9 : vector<2x16x256xf32>
    %cst_5 = arith.constant dense<0.000000e+00> : vector<2x256xf32>
    %11 = vector.multi_reduction <add>, %10, %cst_5 [1] : vector<2x16x256xf32> to vector<2x256xf32>
    %12 = vector.shape_cast %11 : vector<2x256xf32> to vector<2x1x256xf32>
    %13 = tpu.reciprocal %12 {approx = true} : vector<2x1x256xf32> -> vector<2x1x256xf32>
    %14 = vector.broadcast %13 : vector<2x1x256xf32> to vector<2x16x256xf32>
    %15 = arith.mulf %10, %14 : vector<2x16x256xf32>
    %16 = vector.shape_cast %15 : vector<2x16x256xf32> to vector<32x256xf32>
    %17 = arith.truncf %16 : vector<32x256xf32> to vector<32x256xbf16>
    %c0_6 = arith.constant 0 : index
    %c0_7 = arith.constant 0 : index
    %18 = vector.load %arg3[%c0_6, %c0_7] : memref<256x128xbf16, #tpu.memory_space<vmem>>, vector<256x128xbf16>
    %cst_8 = arith.constant dense<0.000000e+00> : vector<32x128xf32>
    %19 = tpu.matmul %17, %18, %cst_8 {dimension_numbers = #tpu.dot_dimension_numbers<[1], [0], [0], [1], [0, 0, 1, 1], [], []>} : vector<32x256xbf16>, vector<256x128xbf16>, vector<32x128xf32> -> vector<32x128xf32>
    %20 = vector.shape_cast %19 : vector<32x128xf32> to vector<2x16x128xf32>
    %c0_9 = arith.constant 0 : index
    %c0_10 = arith.constant 0 : index
    %c0_11 = arith.constant 0 : index
    %21 = vector.load %arg4[%c0_9, %c0_10, %c0_11] : memref<2x16x128xf32, #tpu.memory_space<vmem>>, vector<2x16x128xf32>
    tpu.vector_store %arg4[%c0_9, %c0_10, %c0_11], %20 {strides = array<i32>} : memref<2x16x128xf32, #tpu.memory_space<vmem>>, vector<2x16x128xf32>,
    return
  }
  func.func @transform_0(%arg0: i32) -> (i32, i32, i32) {
    %c0_i32 = arith.constant 0 : i32
    %c0_i32_0 = arith.constant 0 : i32
    %c0_i32_1 = arith.constant 0 : i32
    return %arg0, %c0_i32, %c0_i32_0 : i32, i32, i32
  }
  func.func @transform_1(%arg0: i32) -> (i32, i32) {
    %c0_i32 = arith.constant 0 : i32
    %c0_i32_0 = arith.constant 0 : i32
    %c0_i32_1 = arith.constant 0 : i32
    return %c0_i32, %c0_i32_0 : i32, i32
  }
  func.func @transform_2(%arg0: i32) -> (i32, i32) {
    %c0_i32 = arith.constant 0 : i32
    %c0_i32_0 = arith.constant 0 : i32
    %c0_i32_1 = arith.constant 0 : i32
    return %c0_i32, %c0_i32_0 : i32, i32
  }
  func.func @transform_3(%arg0: i32) -> (i32, i32, i32) {
    %c0_i32 = arith.constant 0 : i32
    %c0_i32_0 = arith.constant 0 : i32
    %c0_i32_1 = arith.constant 0 : i32
    return %arg0, %c0_i32, %c0_i32_0 : i32, i32, i32
  }
}

module attributes {stable_mosaic.version = 11 : i64} {
  func.func @_external_attn_kernel(%arg0: i32, %arg1: memref<2x16x128xf32, #tpu.memory_space<vmem>>, %arg2: memref<128x256xbf16, #tpu.memory_space<vmem>>, %arg3: memref<256x128xbf16, #tpu.memory_space<vmem>>, %arg4: memref<2x16x128xf32, #tpu.memory_space<vmem>>) attributes {dimension_semantics = [#tpu.dimension_semantics<parallel>], iteration_bounds = array<i64: 2>, scalar_prefetch = 0 : i64, scratch_operands = 0 : i64, tpu.core_type = #tpu.core_type<tc>, window_params = [{transform_indices = @transform_0, window_bounds = array<i64: 2, 16, 128>}, {pipeline_mode = #tpu.pipeline_mode<synchronous>, transform_indices = @transform_1, window_bounds = array<i64: 128, 256>}, {pipeline_mode = #tpu.pipeline_mode<synchronous>, transform_indices = @transform_2, window_bounds = array<i64: 256, 128>}, {transform_indices = @transform_3, window_bounds = array<i64: 2, 16, 128>}]} {
    %c0 = arith.constant 0 : index
    %c0_0 = arith.constant 0 : index
    %c0_1 = arith.constant 0 : index
    %0 = vector.load %arg1[%c0, %c0_0, %c0_1] : memref<2x16x128xf32, #tpu.memory_space<vmem>>, vector<2x16x128xf32>
    %1 = vector.shape_cast %0 : vector<2x16x128xf32> to vector<32x128xf32>
    %2 = arith.truncf %1 : vector<32x128xf32> to vector<32x128xbf16>
    %c0_2 = arith.constant 0 : index
    %c0_3 = arith.constant 0 : index
    %3 = vector.load %arg2[%c0_2, %c0_3] : memref<128x256xbf16, #tpu.memory_space<vmem>>, vector<128x256xbf16>
    %cst = arith.constant dense<0.000000e+00> : vector<32x256xf32>
    %4 = tpu.matmul %2, %3, %cst {dimension_numbers = #tpu.dot_dimension_numbers<[1], [0], [0], [1], [0, 0, 1, 1], [], []>} : vector<32x128xbf16>, vector<128x256xbf16>, vector<32x256xf32> -> vector<32x256xf32>
    %5 = vector.shape_cast %4 : vector<32x256xf32> to vector<2x16x256xf32>
    %cst_4 = arith.constant dense<0xFF800000> : vector<2x256xf32>
    %6 = vector.multi_reduction <maximumf>, %5, %cst_4 [1] : vector<2x16x256xf32> to vector<2x256xf32>
    %7 = vector.shape_cast %6 : vector<2x256xf32> to vector<2x1x256xf32>
    %8 = vector.broadcast %7 : vector<2x1x256xf32> to vector<2x16x256xf32>
    %9 = arith.subf %5, %8 : vector<2x16x256xf32>
    %10 = math.exp %9 : vector<2x16x256xf32>
    %cst_5 = arith.constant dense<0.000000e+00> : vector<2x256xf32>
    %11 = vector.multi_reduction <add>, %10, %cst_5 [1] : vector<2x16x256xf32> to vector<2x256xf32>
    %12 = vector.shape_cast %11 : vector<2x256xf32> to vector<2x1x256xf32>
    %13 = tpu.reciprocal %12 {approx = true} : vector<2x1x256xf32> -> vector<2x1x256xf32>
    %14 = vector.broadcast %13 : vector<2x1x256xf32> to vector<2x16x256xf32>
    %15 = arith.mulf %10, %14 : vector<2x16x256xf32>
    %16 = vector.shape_cast %15 : vector<2x16x256xf32> to vector<32x256xf32>
    %17 = arith.truncf %16 : vector<32x256xf32> to vector<32x256xbf16>
    %c0_6 = arith.constant 0 : index
    %c0_7 = arith.constant 0 : index
    %18 = vector.load %arg3[%c0_6, %c0_7] : memref<256x128xbf16, #tpu.memory_space<vmem>>, vector<256x128xbf16>
    %cst_8 = arith.constant dense<0.000000e+00> : vector<32x128xf32>
    %19 = tpu.matmul %17, %18, %cst_8 {dimension_numbers = #tpu.dot_dimension_numbers<[1], [0], [0], [1], [0, 0, 1, 1], [], []>} : vector<32x256xbf16>, vector<256x128xbf16>, vector<32x128xf32> -> vector<32x128xf32>
    %20 = vector.shape_cast %19 : vector<32x128xf32> to vector<2x16x128xf32>
    %c0_9 = arith.constant 0 : index
    %c0_10 = arith.constant 0 : index
    %c0_11 = arith.constant 0 : index
    %21 = vector.load %arg4[%c0_9, %c0_10, %c0_11] : memref<2x16x128xf32, #tpu.memory_space<vmem>>, vector<2x16x128xf32>
    tpu.vector_store %arg4[%c0_9, %c0_10, %c0_11], %20 {strides = array<i32>} : memref<2x16x128xf32, #tpu.memory_space<vmem>>, vector<2x16x128xf32>,
    return
  }
  func.func @transform_0(%arg0: i32) -> (i32, i32, i32) {
    %c0_i32 = arith.constant 0 : i32
    %c0_i32_0 = arith.constant 0 : i32
    %c0_i32_1 = arith.constant 0 : i32
    return %arg0, %c0_i32, %c0_i32_0 : i32, i32, i32
  }
  func.func @transform_1(%arg0: i32) -> (i32, i32) {
    %c0_i32 = arith.constant 0 : i32
    %c0_i32_0 = arith.constant 0 : i32
    %c0_i32_1 = arith.constant 0 : i32
    return %c0_i32, %c0_i32_0 : i32, i32
  }
  func.func @transform_2(%arg0: i32) -> (i32, i32) {
    %c0_i32 = arith.constant 0 : i32
    %c0_i32_0 = arith.constant 0 : i32
    %c0_i32_1 = arith.constant 0 : i32
    return %c0_i32, %c0_i32_0 : i32, i32
  }
  func.func @transform_3(%arg0: i32) -> (i32, i32, i32) {
    %c0_i32 = arith.constant 0 : i32
    %c0_i32_0 = arith.constant 0 : i32
    %c0_i32_1 = arith.constant 0 : i32
    return %arg0, %c0_i32, %c0_i32_0 : i32, i32, i32
  }
}

</mosaic_0001>

<llo_original>
// kernel: tpu_custom_call.1
$region0: #{tpu_custom_call.1}
  #allocation0 [shape = 'u32[]', space=smem, size = 0x4, offset = 0x4, fixed_abs, tag = 'smem constant byte address 0x4 - core index']
  #allocation1 [shape = 'u32[144,128]{1,0:T(1,128)}', space=vmem, size = 0x12000, scoped, tag = 'internal scratch']
  %s0 = inlined_call_operand.hbm [shape: f32[4,16,128], index: 0, kind: input, shape index: {}]
  %s1 = inlined_call_operand.hbm [shape: bf16[128,256], index: 1, kind: input, shape index: {}]
  %s2 = inlined_call_operand.hbm [shape: bf16[256,128], index: 2, kind: input, shape index: {}]
  %s3 = inlined_call_operand.hbm [shape: f32[4,16,128], index: 3, kind: output, shape index: {}]
  %s4 = sld [smem:[#allocation0]]
  $region57: #{tpu_custom_call.1} parent=0
    _
  %s6 = ssub.s32 1, %s4
  %s7 = scalar_select 0, %s6, %s4
  $region1: #{tpu_custom_call.1} parent=0
    #allocation2 [shape = 'u8[32768]{0}', space=vmem, size = 0x8000, scoped, tag = 'input window, operand 0']
    #allocation3 [shape = 's32[2]{0}', space=sflag, size = 0x8, scoped, tag = 'scoped memory for tpu_custom_call.1']
    #allocation4 [shape = 's32[2]{0}', space=sflag, size = 0x8, scoped, tag = 'scoped memory for tpu_custom_call.1']
    #allocation5 [shape = 'u8[65536]{0}', space=vmem, size = 0x10000, scoped, tag = 'input window, operand 1, single buffered']
    #allocation6 [shape = 's32[1]{0}', space=sflag, size = 0x4, scoped, tag = 'scoped memory for tpu_custom_call.1']
    #allocation7 [shape = 'u8[65536]{0}', space=vmem, size = 0x10000, scoped, tag = 'input window, operand 2, single buffered']
    #allocation8 [shape = 'u8[32768]{0}', space=vmem, size = 0x8000, scoped, tag = 'output window, operand 0']
    %8 = vsyncpa [#allocation3], 0
    %s9 = scalar_lea.sflag [#allocation3], 1
    %10 = vsyncpa %s9, 0
    %11 = vsyncpa [#allocation6], 0
    %12 = vsyncpa [#allocation4], 0
    %s13 = scalar_lea.sflag [#allocation4], 1
    %14 = vsyncpa %s13, 0
    loop: start=0, step=1, limit=4
    $region2: #{tpu_custom_call.1} parent=1 // loop_pre_header
      _
    $region3: #{tpu_custom_call.1} parent=1 // loop_header
      %s16 = sphi 0, %s20
      %p17 = scmp.ge.s32.totalorder %s16, 4
      %s26 = sphi 0, %s28
      %s29 = sphi 0, %s26
      %s30 = sphi 0, %s29
      %s46 = sphi 0, %s30
      %s50 = sphi 0, %s50
      %s52 = sphi 0, %s50
      %s53 = sphi 0, %s52
      %s67 = sphi 0, %s53
      %s71 = sphi 0, %s71
      %s73 = sphi 0, %s71
      %s74 = sphi 0, %s73
      %s88 = sphi 0, %s74
      %s94 = sphi 0, %s96
      %s97 = sphi 0, %s94
      %s98 = sphi 0, %s97
      %s114 = sphi 0, %s98
    $region4: #{tpu_custom_call.1} parent=1 // loop_header_branch
      %19 = sbr.rel (%p17) target = $region8
    $region5: #{tpu_custom_call.1} parent=1 // loop_body
      %s21 = ssub.s32 %s16, 1
      %s22 = ssub.s32 %s16, 2
      %s23 = sadd.s32 %s16, 1
      %s24 = ssub.s32 %s16, %s23
      %p25 = scmp.eq.s32.totalorder %s24, 0
      %s27 = sadd.s32 %s26, 1
      %s28 = scalar_select %p25, %s26, %s27
      %p31 = pneg %p25
      %p32 = scmp.eq.s32.totalorder %s16, 1
      %p33 = por %p31, %p32
      %p34 = scmp.ne.s32.totalorder %s26, %s29
      %p35 = scmp.eq.s32.totalorder %s16, 0
      %p36 = por %p34, %p35
      %p37 = scmp.ne.s32.totalorder %s26, %s29
      %p38 = scmp.eq.s32.totalorder %s21, 1
      %p39 = por %p37, %p38
      %p40 = scmp.ne.s32.totalorder %s29, %s30
      %p41 = scmp.eq.s32.totalorder %s21, 0
      %p42 = por %p40, %p41
      %p43 = scmp.ne.s32.totalorder %s29, %s30
      %p44 = scmp.eq.s32.totalorder %s22, 1
      %p45 = por %p43, %p44
      %p47 = scmp.ne.s32.totalorder %s30, %s46
      %p48 = scmp.eq.s32.totalorder %s22, 0
      %p49 = por %p47, %p48
      %s51 = sadd.s32 %s50, 1
      %p54 = scmp.eq.s32.totalorder %s16, 1
      %p55 = scmp.ne.s32.totalorder %s50, %s52
      %p56 = scmp.eq.s32.totalorder %s16, 0
      %p57 = por %p55, %p56
      %p58 = scmp.ne.s32.totalorder %s50, %s52
      %p59 = scmp.eq.s32.totalorder %s21, 1
      %p60 = por %p58, %p59
      %p61 = scmp.ne.s32.totalorder %s52, %s53
      %p62 = scmp.eq.s32.totalorder %s21, 0
      %p63 = por %p61, %p62
      %p64 = scmp.ne.s32.totalorder %s52, %s53
      %p65 = scmp.eq.s32.totalorder %s22, 1
      %p66 = por %p64, %p65
      %p68 = scmp.ne.s32.totalorder %s53, %s67
      %p69 = scmp.eq.s32.totalorder %s22, 0
      %p70 = por %p68, %p69
      %s72 = sadd.s32 %s71, 1
      %p75 = scmp.eq.s32.totalorder %s16, 1
      %p76 = scmp.ne.s32.totalorder %s71, %s73
      %p77 = scmp.eq.s32.totalorder %s16, 0
      %p78 = por %p76, %p77
      %p79 = scmp.ne.s32.totalorder %s71, %s73
      %p80 = scmp.eq.s32.totalorder %s21, 1
      %p81 = por %p79, %p80
      %p82 = scmp.ne.s32.totalorder %s73, %s74
      %p83 = scmp.eq.s32.totalorder %s21, 0
      %p84 = por %p82, %p83
      %p85 = scmp.ne.s32.totalorder %s73, %s74
      %p86 = scmp.eq.s32.totalorder %s22, 1
      %p87 = por %p85, %p86
      %p89 = scmp.ne.s32.totalorder %s74, %s88
      %p90 = scmp.eq.s32.totalorder %s22, 0
      %p91 = por %p89, %p90
      %s92 = ssub.s32 %s16, %s23
      %p93 = scmp.eq.s32.totalorder %s92, 0
      %s95 = sadd.s32 %s94, 1
      %s96 = scalar_select %p93, %s94, %s95
      %p99 = pneg %p93
      %p100 = scmp.eq.s32.totalorder %s16, 1
      %p101 = por %p99, %p100
      %p102 = scmp.ne.s32.totalorder %s94, %s97
      %p103 = scmp.eq.s32.totalorder %s16, 0
      %p104 = por %p102, %p103
      %p105 = scmp.ne.s32.totalorder %s94, %s97
      %p106 = scmp.eq.s32.totalorder %s21, 1
      %p107 = por %p105, %p106
      %p108 = scmp.ne.s32.totalorder %s97, %s98
      %p109 = scmp.eq.s32.totalorder %s21, 0
      %p110 = por %p108, %p109
      %p111 = scmp.ne.s32.totalorder %s97, %s98
      %p112 = scmp.eq.s32.totalorder %s22, 1
      %p113 = por %p111, %p112
      %p115 = scmp.ne.s32.totalorder %s98, %s114
      %p116 = scmp.eq.s32.totalorder %s22, 0
      %p117 = por %p115, %p116
      %p118 = scmp.le.s32.totalorder 1, %s16
      %p119 = scmp.lt.s32.totalorder %s16, 3
      %p120 = pnand %p118, %p119
      %p121 = pneg %p120
      // Predicated region
      $region9: #{tpu_custom_call.1} parent=5 // pred_check
        _
      $region10: #{tpu_custom_call.1} parent=5 // pred_check_branch
        %123 = sbr.rel (%p120) target = $region12
      $region11: #{tpu_custom_call.1} parent=5 // pred_region
        %s124 = ssub.s32 %s16, 1
        // Predicated region
        $region13: #{tpu_custom_call.1} parent=11 // pred_check
          %p125 = pneg %p63
        $region14: #{tpu_custom_call.1} parent=11 // pred_check_branch
          %127 = sbr.rel (%p125) target = $region16
        $region15: #{tpu_custom_call.1} parent=11 // pred_region
          %s129 = ssub.s32 2048, 2048
          %130 = vsyncadd [#allocation6], %s129
          %s131 = sshll.u32 [#allocation5], 4
          %s132 = int_to_ptr.vmem [resolvable:$true] %s131
          %137 = dma.hbm_to_vmem [thread:$0]  %s1, 2048, %s132, [#allocation6], 128, 128, 8
        $region16: #{tpu_custom_call.1} parent=11 // pred_fallthru
          _
        // Predicated region
        $region17: #{tpu_custom_call.1} parent=11 // pred_check
          %p138 = pneg %p84
        $region18: #{tpu_custom_call.1} parent=11 // pred_check_branch
          %140 = sbr.rel (%p138) target = $region20
        $region19: #{tpu_custom_call.1} parent=11 // pred_region
          %s142 = ssub.s32 2048, 2048
          %143 = vsyncadd [#allocation6], %s142
          %s144 = sshll.u32 [#allocation7], 4
          %s145 = int_to_ptr.vmem [resolvable:$true] %s144
          %150 = dma.hbm_to_vmem [thread:$0]  %s2, 2048, %s145, [#allocation6], 64, 64, 4
        $region20: #{tpu_custom_call.1} parent=11 // pred_fallthru
          _
      $region12: #{tpu_custom_call.1} parent=5 // pred_fallthru
        _
      %p151 = scmp.lt.s32.totalorder %s16, 2
      // Predicated region
      $region21: #{tpu_custom_call.1} parent=5 // pred_check
        %p152 = pneg %p151
      $region22: #{tpu_custom_call.1} parent=5 // pred_check_branch
        %154 = sbr.rel (%p152) target = $region24
      $region23: #{tpu_custom_call.1} parent=5 // pred_region
        // Predicated region
        $region25: #{tpu_custom_call.1} parent=23 // pred_check
          %p155 = pneg %p36
        $region26: #{tpu_custom_call.1} parent=23 // pred_check_branch
          %157 = sbr.rel (%p155) target = $region28
        $region27: #{tpu_custom_call.1} parent=23 // pred_region
          %s158 = sand.u32 %s26, 1
          %s159 = scalar_lea.sflag [#allocation3], %s158
          %s160 = sand.u32 %s26, 1
          %s161 = smul.addr %s160, 32
          %s162 = scalar_lea.vmem [#allocation2], %s161
          %s163 = smul.u32 2, %s16
          %s165 = ssub.s32 512, 512
          %166 = vsyncadd %s159, %s165
          %s167 = smul.addr %s163, 2
          %s168 = smul.addr %s167, 128
          %s169 = scalar_lea.hbm %s0, %s168
          %s170 = sshll.u32 %s162, 4
          %s171 = int_to_ptr.vmem [resolvable:$true] %s170
          %176 = dma.hbm_to_vmem [thread:$0]  %s169, 512, %s171, %s159, 128, 128, 8
        $region28: #{tpu_custom_call.1} parent=23 // pred_fallthru
          _
      $region24: #{tpu_custom_call.1} parent=5 // pred_fallthru
        _
      %p177 = scmp.le.s32.totalorder 1, %s16
      %p178 = scmp.lt.s32.totalorder %s16, 3
      %p179 = pnand %p177, %p178
      %p180 = pneg %p179
      // Predicated region
      $region29: #{tpu_custom_call.1} parent=5 // pred_check
        _
      $region30: #{tpu_custom_call.1} parent=5 // pred_check_branch
        %182 = sbr.rel (%p179) target = $region32
      $region31: #{tpu_custom_call.1} parent=5 // pred_region
        %s183 = ssub.s32 %s16, 1
        %s184 = sand.u32 %s29, 1
        %s185 = scalar_lea.sflag [#allocation3], %s184
        %s186 = sand.u32 %s29, 1
        %s187 = smul.addr %s186, 32
        %s188 = scalar_lea.vmem [#allocation2], %s187
        // Predicated region
        $region33: #{tpu_custom_call.1} parent=31 // pred_check
          %p189 = pneg %p42
        $region34: #{tpu_custom_call.1} parent=31 // pred_check_branch
          %191 = sbr.rel (%p189) target = $region36
        $region35: #{tpu_custom_call.1} parent=31 // pred_region
          %192 = dma.done %s185, 512
        $region36: #{tpu_custom_call.1} parent=31 // pred_fallthru
          _
        // Predicated region
        $region37: #{tpu_custom_call.1} parent=31 // pred_check
          %p193 = pneg %p63
        $region38: #{tpu_custom_call.1} parent=31 // pred_check_branch
          %195 = sbr.rel (%p193) target = $region40
        $region39: #{tpu_custom_call.1} parent=31 // pred_region
          %196 = dma.done [#allocation6], 2048
        $region40: #{tpu_custom_call.1} parent=31 // pred_fallthru
          _
        // Predicated region
        $region41: #{tpu_custom_call.1} parent=31 // pred_check
          %p197 = pneg %p84
        $region42: #{tpu_custom_call.1} parent=31 // pred_check_branch
          %199 = sbr.rel (%p197) target = $region44
        $region43: #{tpu_custom_call.1} parent=31 // pred_region
          %200 = dma.done [#allocation6], 2048
        $region44: #{tpu_custom_call.1} parent=31 // pred_fallthru
          _
        %s201 = sand.u32 %s29, 1
        %s202 = scalar_lea.sflag [#allocation3], %s201
        %s203 = sand.u32 %s29, 1
        %s204 = smul.addr %s203, 32
        %s205 = scalar_lea.vmem [#allocation2], %s204
        %p206 = pneg %p42
        %p207 = pneg %p39
        %p208 = pneg %p63
        %p209 = pneg %p60
        %p210 = pneg %p84
        %p211 = pneg %p81
        %p212 = pneg %p110
        %p213 = pneg %p107
        %s214 = sand.u32 %s97, 1
        %s215 = scalar_lea.sflag [#allocation4], %s214
        %s216 = sand.u32 %s97, 1
        %s217 = smul.addr %s216, 32
        %s218 = scalar_lea.vmem [#allocation8], %s217
        %s219 = smul.u32 2, %s21
        %s220 = smul.u32 2, %s21
        %v222 = vld [vmem:[%s188] sm:$0xff]
        %v223 = vld [vmem:[%s188 + $0x8] sm:$0xff]
        %v224 = vld [vmem:[%s188 + $0x10] sm:$0xff]
        %v225 = vld [vmem:[%s188 + $0x18] sm:$0xff]
        %v226 = vpack.c.bf16 %v223, %v222
        %v227 = vpack.c.bf16 %v225, %v224
        %v228 = vld [vmem:[#allocation5] sm:$0xff]
        %v229 = vld [vmem:[#allocation5 + $0x8] sm:$0xff]
        %v230 = vld [vmem:[#allocation5 + $0x10] sm:$0xff]
        %v231 = vld [vmem:[#allocation5 + $0x18] sm:$0xff]
        %v232 = vld [vmem:[#allocation5 + $0x20] sm:$0xff]
        %v233 = vld [vmem:[#allocation5 + $0x28] sm:$0xff]
        %v234 = vld [vmem:[#allocation5 + $0x30] sm:$0xff]
        %v235 = vld [vmem:[#allocation5 + $0x38] sm:$0xff]
        %v236 = vld [vmem:[#allocation5 + $0x40] sm:$0xff]
        %v237 = vld [vmem:[#allocation5 + $0x48] sm:$0xff]
        %v238 = vld [vmem:[#allocation5 + $0x50] sm:$0xff]
        %v239 = vld [vmem:[#allocation5 + $0x58] sm:$0xff]
        %v240 = vld [vmem:[#allocation5 + $0x60] sm:$0xff]
        %v241 = vld [vmem:[#allocation5 + $0x68] sm:$0xff]
        %v242 = vld [vmem:[#allocation5 + $0x70] sm:$0xff]
        %v243 = vld [vmem:[#allocation5 + $0x78] sm:$0xff]
        %v260 = vunpack.c.l.b16 %v228
        %v261 = vunpack.c.h.b16 %v228
        %v262 = vunpack.c.l.b16 %v229
        %v263 = vunpack.c.h.b16 %v229
        %v264 = vunpack.c.l.b16 %v230
        %v265 = vunpack.c.h.b16 %v230
        %v266 = vunpack.c.l.b16 %v231
        %v267 = vunpack.c.h.b16 %v231
        %v268 = vunpack.c.l.b16 %v232
        %v269 = vunpack.c.h.b16 %v232
        %v270 = vunpack.c.l.b16 %v233
        %v271 = vunpack.c.h.b16 %v233
        %v272 = vunpack.c.l.b16 %v234
        %v273 = vunpack.c.h.b16 %v234
        %v274 = vunpack.c.l.b16 %v235
        %v275 = vunpack.c.h.b16 %v235
        %v276 = vunpack.c.l.b16 %v236
        %v277 = vunpack.c.h.b16 %v236
        %v278 = vunpack.c.l.b16 %v237
        %v279 = vunpack.c.h.b16 %v237
        %v280 = vunpack.c.l.b16 %v238
        %v281 = vunpack.c.h.b16 %v238
        %v282 = vunpack.c.l.b16 %v239
        %v283 = vunpack.c.h.b16 %v239
        %v284 = vunpack.c.l.b16 %v240
        %v285 = vunpack.c.h.b16 %v240
        %v286 = vunpack.c.l.b16 %v241
        %v287 = vunpack.c.h.b16 %v241
        %v288 = vunpack.c.l.b16 %v242
        %v289 = vunpack.c.h.b16 %v242
        %v290 = vunpack.c.l.b16 %v243
        %v291 = vunpack.c.h.b16 %v243
        %v292 = vpack.c.b16 %v262, %v260
        %v293 = vpack.c.b16 %v263, %v261
        %v294 = vpack.c.b16 %v266, %v264
        %v295 = vpack.c.b16 %v267, %v265
        %v296 = vpack.c.b16 %v270, %v268
        %v297 = vpack.c.b16 %v271, %v269
        %v298 = vpack.c.b16 %v274, %v272
        %v299 = vpack.c.b16 %v275, %v273
        %v300 = vpack.c.b16 %v278, %v276
        %v301 = vpack.c.b16 %v279, %v277
        %v302 = vpack.c.b16 %v282, %v280
        %v303 = vpack.c.b16 %v283, %v281
        %v304 = vpack.c.b16 %v286, %v284
        %v305 = vpack.c.b16 %v287, %v285
        %v306 = vpack.c.b16 %v290, %v288
        %v307 = vpack.c.b16 %v291, %v289
        %324 = vmatprep.subr.bf16.mxu0 %v293
        %325 = vmatpush1.bf16.msra.mxu0 %v292
        %326 = vmatprep.subr.bf16.mxu0 %v295
        %327 = vmatpush1.bf16.msra.mxu0 %v294
        %328 = vmatprep.subr.bf16.mxu0 %v297
        %329 = vmatpush1.bf16.msra.mxu0 %v296
        %330 = vmatprep.subr.bf16.mxu0 %v299
        %331 = vmatpush1.bf16.msra.mxu0 %v298
        %332 = vmatprep.subr.bf16.mxu0 %v301
        %333 = vmatpush1.bf16.msra.mxu0 %v300
        %334 = vmatprep.subr.bf16.mxu0 %v303
        %335 = vmatpush1.bf16.msra.mxu0 %v302
        %336 = vmatprep.subr.bf16.mxu0 %v305
        %337 = vmatpush1.bf16.msra.mxu0 %v304
        %338 = vmatprep.subr.bf16.mxu0 %v307
        %339 = vmatpush1.bf16.msra.mxu0 %v306
        %340 = vmatprep.subr.bf16.mxu0 0
        %341 = vmatpush1.bf16.msra.mxu0 0
        %342 = vmatprep.subr.bf16.mxu0 0
        %343 = vmatpush1.bf16.msra.mxu0 0
        %344 = vmatprep.subr.bf16.mxu0 0
        %345 = vmatpush1.bf16.msra.mxu0 0
        %346 = vmatprep.subr.bf16.mxu0 0
        %347 = vmatpush1.bf16.msra.mxu0 0
        %348 = vmatprep.subr.bf16.mxu0 0
        %349 = vmatpush1.bf16.msra.mxu0 0
        %350 = vmatprep.subr.bf16.mxu0 0
        %351 = vmatpush1.bf16.msra.mxu0 0
        %352 = vmatprep.subr.bf16.mxu0 0
        %353 = vmatpush1.bf16.msra.mxu0 0
        %354 = vmatprep.subr.bf16.mxu0 0
        %355 = vmatpush1.bf16.msra.mxu0 0
        %356 = vmatprep.mubr.bf16.mxu0 0
        %357 = vmatmul.mubr.bf16.gmra.mrb[0].mxu0 %v226
        %v358 = vpop.f32.mrb[0].mxu0
        %v359 = vadd.f32 0.0, %v358
        %v360 = vpop.f32.mrb[0].mxu0
        %v361 = vadd.f32 0.0, %v360
        %v362 = vpop.f32.mrb[0].mxu0
        %v363 = vadd.f32 0.0, %v362
        %v364 = vpop.f32.mrb[0].mxu0
        %v365 = vadd.f32 0.0, %v364
        %366 = vmatprep.mubr.bf16.mxu0 0
        %367 = vmatmul.mubr.bf16.gmra.mrb[0].mxu0 %v227
        %v368 = vpop.f32.mrb[0].mxu0
        %v369 = vadd.f32 0.0, %v368
        %v370 = vpop.f32.mrb[0].mxu0
        %v371 = vadd.f32 0.0, %v370
        %v372 = vpop.f32.mrb[0].mxu0
        %v373 = vadd.f32 0.0, %v372
        %v374 = vpop.f32.mrb[0].mxu0
        %v375 = vadd.f32 0.0, %v374
        %376 = vdwg.mxu0
        %v377 = vmax.f32 %v359, %v363
        %v378 = vrot.slane %v377, 4
        %v379 = vmax.f32 %v377, %v378
        %v380 = vrot.slane %v379, 2
        %v381 = vmax.f32 %v379, %v380
        %v382 = vrot.slane %v381, 1
        %v383 = vmax.f32 %v381, %v382
        %v384 = vmax.f32 %v361, %v365
        %v385 = vrot.slane %v384, 4
        %v386 = vmax.f32 %v384, %v385
        %v387 = vrot.slane %v386, 2
        %v388 = vmax.f32 %v386, %v387
        %v389 = vrot.slane %v388, 1
        %v390 = vmax.f32 %v388, %v389
        %v391 = vmax.f32 %v369, %v373
        %v392 = vrot.slane %v391, 4
        %v393 = vmax.f32 %v391, %v392
        %v394 = vrot.slane %v393, 2
        %v395 = vmax.f32 %v393, %v394
        %v396 = vrot.slane %v395, 1
        %v397 = vmax.f32 %v395, %v396
        %v398 = vmax.f32 %v371, %v375
        %v399 = vrot.slane %v398, 4
        %v400 = vmax.f32 %v398, %v399
        %v401 = vrot.slane %v400, 2
        %v402 = vmax.f32 %v400, %v401
        %v403 = vrot.slane %v402, 1
        %v404 = vmax.f32 %v402, %v403
        %v405 = vsub.f32 %v359, %v383
        %v406 = vsub.f32 %v361, %v390
        %v407 = vsub.f32 %v363, %v383
        %v408 = vsub.f32 %v365, %v390
        %v409 = vsub.f32 %v369, %v397
        %v410 = vsub.f32 %v371, %v404
        %v411 = vsub.f32 %v373, %v397
        %v412 = vsub.f32 %v375, %v404
        %v413 = vmul.f32 %v405, 1.442695
        %v414 = vpow.pop %v413
        %v415 = vmul.f32 %v406, 1.442695
        %v416 = vpow.pop %v415
        %v417 = vmul.f32 %v407, 1.442695
        %v418 = vpow.pop %v417
        %v419 = vmul.f32 %v408, 1.442695
        %v420 = vpow.pop %v419
        %v421 = vmul.f32 %v409, 1.442695
        %v422 = vpow.pop %v421
        %v423 = vmul.f32 %v410, 1.442695
        %v424 = vpow.pop %v423
        %v425 = vmul.f32 %v411, 1.442695
        %v426 = vpow.pop %v425
        %v427 = vmul.f32 %v412, 1.442695
        %v428 = vpow.pop %v427
        %v429 = vadd.f32 %v414, %v418
        %v430 = vrot.slane %v429, 4
        %v431 = vadd.f32 %v429, %v430
        %v432 = vrot.slane %v431, 2
        %v433 = vadd.f32 %v431, %v432
        %v434 = vrot.slane %v433, 1
        %v435 = vadd.f32 %v433, %v434
        %v436 = vadd.f32 %v416, %v420
        %v437 = vrot.slane %v436, 4
        %v438 = vadd.f32 %v436, %v437
        %v439 = vrot.slane %v438, 2
        %v440 = vadd.f32 %v438, %v439
        %v441 = vrot.slane %v440, 1
        %v442 = vadd.f32 %v440, %v441
        %v443 = vadd.f32 %v422, %v426
        %v444 = vrot.slane %v443, 4
        %v445 = vadd.f32 %v443, %v444
        %v446 = vrot.slane %v445, 2
        %v447 = vadd.f32 %v445, %v446
        %v448 = vrot.slane %v447, 1
        %v449 = vadd.f32 %v447, %v448
        %v450 = vadd.f32 %v424, %v428
        %v451 = vrot.slane %v450, 4
        %v452 = vadd.f32 %v450, %v451
        %v453 = vrot.slane %v452, 2
        %v454 = vadd.f32 %v452, %v453
        %v455 = vrot.slane %v454, 1
        %v456 = vadd.f32 %v454, %v455
        %v457 = vrcp.pop %v435
        %v458 = vrcp.pop %v442
        %v459 = vrcp.pop %v449
        %v460 = vrcp.pop %v456
        %v461 = vmul.f32 %v414, %v457
        %v462 = vmul.f32 %v416, %v458
        %v463 = vmul.f32 %v418, %v457
        %v464 = vmul.f32 %v420, %v458
        %v465 = vmul.f32 %v422, %v459
        %v466 = vmul.f32 %v424, %v460
        %v467 = vmul.f32 %v426, %v459
        %v468 = vmul.f32 %v428, %v460
        %v469 = vpack.c.bf16 %v463, %v461
        %v470 = vpack.c.bf16 %v464, %v462
        %v471 = vpack.c.bf16 %v467, %v465
        %v472 = vpack.c.bf16 %v468, %v466
        %v473 = vld [vmem:[#allocation7] sm:$0xf]
        %v474 = vld [vmem:[#allocation7 + $0x4] sm:$0xf]
        %v475 = vld [vmem:[#allocation7 + $0x8] sm:$0xf]
        %v476 = vld [vmem:[#allocation7 + $0xc] sm:$0xf]
        %v477 = vld [vmem:[#allocation7 + $0x10] sm:$0xf]
        %v478 = vld [vmem:[#allocation7 + $0x14] sm:$0xf]
        %v479 = vld [vmem:[#allocation7 + $0x18] sm:$0xf]
        %v480 = vld [vmem:[#allocation7 + $0x1c] sm:$0xf]
        %v481 = vld [vmem:[#allocation7 + $0x20] sm:$0xf]
        %v482 = vld [vmem:[#allocation7 + $0x24] sm:$0xf]
        %v483 = vld [vmem:[#allocation7 + $0x28] sm:$0xf]
        %v484 = vld [vmem:[#allocation7 + $0x2c] sm:$0xf]
        %v485 = vld [vmem:[#allocation7 + $0x30] sm:$0xf]
        %v486 = vld [vmem:[#allocation7 + $0x34] sm:$0xf]
        %v487 = vld [vmem:[#allocation7 + $0x38] sm:$0xf]
        %v488 = vld [vmem:[#allocation7 + $0x3c] sm:$0xf]
        %v489 = vld [vmem:[#allocation7 + $0x40] sm:$0xf]
        %v490 = vld [vmem:[#allocation7 + $0x44] sm:$0xf]
        %v491 = vld [vmem:[#allocation7 + $0x48] sm:$0xf]
        %v492 = vld [vmem:[#allocation7 + $0x4c] sm:$0xf]
        %v493 = vld [vmem:[#allocation7 + $0x50] sm:$0xf]
        %v494 = vld [vmem:[#allocation7 + $0x54] sm:$0xf]
        %v495 = vld [vmem:[#allocation7 + $0x58] sm:$0xf]
        %v496 = vld [vmem:[#allocation7 + $0x5c] sm:$0xf]
        %v497 = vld [vmem:[#allocation7 + $0x60] sm:$0xf]
        %v498 = vld [vmem:[#allocation7 + $0x64] sm:$0xf]
        %v499 = vld [vmem:[#allocation7 + $0x68] sm:$0xf]
        %v500 = vld [vmem:[#allocation7 + $0x6c] sm:$0xf]
        %v501 = vld [vmem:[#allocation7 + $0x70] sm:$0xf]
        %v502 = vld [vmem:[#allocation7 + $0x74] sm:$0xf]
        %v503 = vld [vmem:[#allocation7 + $0x78] sm:$0xf]
        %v504 = vld [vmem:[#allocation7 + $0x7c] sm:$0xf]
        %v537 = vunpack.c.l.b16 %v473
        %v538 = vunpack.c.l.b16 %v474
        %v539 = vunpack.c.l.b16 %v475
        %v540 = vunpack.c.l.b16 %v476
        %v541 = vunpack.c.l.b16 %v477
        %v542 = vunpack.c.l.b16 %v478
        %v543 = vunpack.c.l.b16 %v479
        %v544 = vunpack.c.l.b16 %v480
        %v545 = vunpack.c.l.b16 %v481
        %v546 = vunpack.c.l.b16 %v482
        %v547 = vunpack.c.l.b16 %v483
        %v548 = vunpack.c.l.b16 %v484
        %v549 = vunpack.c.l.b16 %v485
        %v550 = vunpack.c.l.b16 %v486
        %v551 = vunpack.c.l.b16 %v487
        %v552 = vunpack.c.l.b16 %v488
        %v553 = vunpack.c.l.b16 %v489
        %v554 = vunpack.c.l.b16 %v490
        %v555 = vunpack.c.l.b16 %v491
        %v556 = vunpack.c.l.b16 %v492
        %v557 = vunpack.c.l.b16 %v493
        %v558 = vunpack.c.l.b16 %v494
        %v559 = vunpack.c.l.b16 %v495
        %v560 = vunpack.c.l.b16 %v496
        %v561 = vunpack.c.l.b16 %v497
        %v562 = vunpack.c.l.b16 %v498
        %v563 = vunpack.c.l.b16 %v499
        %v564 = vunpack.c.l.b16 %v500
        %v565 = vunpack.c.l.b16 %v501
        %v566 = vunpack.c.l.b16 %v502
        %v567 = vunpack.c.l.b16 %v503
        %v568 = vunpack.c.l.b16 %v504
        %v569 = vpack.c.b16 %v538, %v537
        %v570 = vpack.c.b16 %v540, %v539
        %v571 = vpack.c.b16 %v542, %v541
        %v572 = vpack.c.b16 %v544, %v543
        %v573 = vpack.c.b16 %v546, %v545
        %v574 = vpack.c.b16 %v548, %v547
        %v575 = vpack.c.b16 %v550, %v549
        %v576 = vpack.c.b16 %v552, %v551
        %v577 = vpack.c.b16 %v554, %v553
        %v578 = vpack.c.b16 %v556, %v555
        %v579 = vpack.c.b16 %v558, %v557
        %v580 = vpack.c.b16 %v560, %v559
        %v581 = vpack.c.b16 %v562, %v561
        %v582 = vpack.c.b16 %v564, %v563
        %v583 = vpack.c.b16 %v566, %v565
        %v584 = vpack.c.b16 %v568, %v567
        %601 = vmatprep.subr.bf16.mxu0 0
        %602 = vmatpush1.bf16.msra.mxu0 %v569
        %603 = vmatprep.subr.bf16.mxu0 0
        %604 = vmatpush1.bf16.msra.mxu0 %v570
        %605 = vmatprep.subr.bf16.mxu0 0
        %606 = vmatpush1.bf16.msra.mxu0 %v571
        %607 = vmatprep.subr.bf16.mxu0 0
        %608 = vmatpush1.bf16.msra.mxu0 %v572
        %609 = vmatprep.subr.bf16.mxu0 0
        %610 = vmatpush1.bf16.msra.mxu0 %v573
        %611 = vmatprep.subr.bf16.mxu0 0
        %612 = vmatpush1.bf16.msra.mxu0 %v574
        %613 = vmatprep.subr.bf16.mxu0 0
        %614 = vmatpush1.bf16.msra.mxu0 %v575
        %615 = vmatprep.subr.bf16.mxu0 0
        %616 = vmatpush1.bf16.msra.mxu0 %v576
        %617 = vmatprep.subr.bf16.mxu0 0
        %618 = vmatpush1.bf16.msra.mxu0 %v577
        %619 = vmatprep.subr.bf16.mxu0 0
        %620 = vmatpush1.bf16.msra.mxu0 %v578
        %621 = vmatprep.subr.bf16.mxu0 0
        %622 = vmatpush1.bf16.msra.mxu0 %v579
        %623 = vmatprep.subr.bf16.mxu0 0
        %624 = vmatpush1.bf16.msra.mxu0 %v580
        %625 = vmatprep.subr.bf16.mxu0 0
        %626 = vmatpush1.bf16.msra.mxu0 %v581
        %627 = vmatprep.subr.bf16.mxu0 0
        %628 = vmatpush1.bf16.msra.mxu0 %v582
        %629 = vmatprep.subr.bf16.mxu0 0
        %630 = vmatpush1.bf16.msra.mxu0 %v583
        %631 = vmatprep.subr.bf16.mxu0 0
        %632 = vmatpush1.bf16.msra.mxu0 %v584
        %633 = vmatprep.mubr.bf16.mxu0 %v470
        %634 = vmatmul.mubr.bf16.gmra.mrb[0].mxu0 %v469
        %v635 = vpop.f32.mrb[0].mxu0
        %v636 = vadd.f32 0.0, %v635
        %v637 = vpop.f32.mrb[0].mxu0
        %v638 = vpop.f32.mrb[0].mxu0
        %v639 = vadd.f32 0.0, %v638
        %v640 = vpop.f32.mrb[0].mxu0
        %641 = vmatprep.mubr.bf16.mxu0 %v472
        %642 = vmatmul.mubr.bf16.gmra.mrb[0].mxu0 %v471
        %v643 = vpop.f32.mrb[0].mxu0
        %v644 = vadd.f32 0.0, %v643
        %v645 = vpop.f32.mrb[0].mxu0
        %v646 = vpop.f32.mrb[0].mxu0
        %v647 = vadd.f32 0.0, %v646
        %v648 = vpop.f32.mrb[0].mxu0
        %649 = vdwg.mxu0
        %650 = vst [vmem:[%s218] sm:$0xff] %v636
        %651 = vst [vmem:[%s218 + $0x8] sm:$0xff] %v639
        %652 = vst [vmem:[%s218 + $0x10] sm:$0xff] %v644
        %653 = vst [vmem:[%s218 + $0x18] sm:$0xff] %v647
        %s654 = sand.u32 %s97, 1
        %s655 = scalar_lea.sflag [#allocation4], %s654
        %s656 = sand.u32 %s97, 1
        %s657 = smul.addr %s656, 32
        %s658 = scalar_lea.vmem [#allocation8], %s657
        // Predicated region
        $region45: #{tpu_custom_call.1} parent=31 // pred_check
          %p659 = pneg %p107
        $region46: #{tpu_custom_call.1} parent=31 // pred_check_branch
          %661 = sbr.rel (%p659) target = $region48
        $region47: #{tpu_custom_call.1} parent=31 // pred_region
          %s662 = smul.u32 2, %s21
          %s664 = ssub.s32 512, 512
          %665 = vsyncadd %s655, %s664
          %s666 = smul.addr %s662, 2
          %s667 = smul.addr %s666, 128
          %s668 = scalar_lea.hbm %s3, %s667
          %s669 = sshll.u32 %s658, 4
          %s670 = int_to_ptr.vmem [resolvable:$true] %s669
          %675 = dma.vmem_to_hbm [thread:$0]  %s670, 512, %s668, %s655, 128, 128, 8
        $region48: #{tpu_custom_call.1} parent=31 // pred_fallthru
          _
      $region32: #{tpu_custom_call.1} parent=5 // pred_fallthru
        _
      %p676 = scmp.le.s32.totalorder 2, %s16
      // Predicated region
      $region49: #{tpu_custom_call.1} parent=5 // pred_check
        %p677 = pneg %p676
      $region50: #{tpu_custom_call.1} parent=5 // pred_check_branch
        %679 = sbr.rel (%p677) target = $region52
      $region51: #{tpu_custom_call.1} parent=5 // pred_region
        %s680 = ssub.s32 %s16, 2
        // Predicated region
        $region53: #{tpu_custom_call.1} parent=51 // pred_check
          %p681 = pneg %p113
        $region54: #{tpu_custom_call.1} parent=51 // pred_check_branch
          %683 = sbr.rel (%p681) target = $region56
        $region55: #{tpu_custom_call.1} parent=51 // pred_region
          %s684 = sand.u32 %s98, 1
          %s685 = scalar_lea.sflag [#allocation4], %s684
          %s686 = sand.u32 %s98, 1
          %s687 = smul.addr %s686, 32
          %s688 = scalar_lea.vmem [#allocation8], %s687
          %689 = dma.done %s685, 512
        $region56: #{tpu_custom_call.1} parent=51 // pred_fallthru
          _
      $region52: #{tpu_custom_call.1} parent=5 // pred_fallthru
        _
    $region6: #{tpu_custom_call.1} parent=1 // loop_footer
      %s20 = sadd.s32 1, %s16
    $region7: #{tpu_custom_call.1} parent=1 // loop_footer_branch
      %15 = sbr.rel target = $region3
    $region8: #{tpu_custom_call.1} parent=1 // loop_exit
      _
    %690 = vsyncpa [#allocation3], 1
    %s691 = scalar_lea.sflag [#allocation3], 1
    %692 = vsyncpa %s691, 1
    %693 = vsyncpa [#allocation6], 1
    %694 = vsyncpa [#allocation4], 1
    %s695 = scalar_lea.sflag [#allocation4], 1
    %696 = vsyncpa %s695, 1

// kernel: tpu_custom_call.1
$region0: #{tpu_custom_call.1}
  #allocation0 [shape = 'u32[]', space=smem, size = 0x4, offset = 0x4, fixed_abs, tag = 'smem constant byte address 0x4 - core index']
  #allocation1 [shape = 'u32[144,128]{1,0:T(1,128)}', space=vmem, size = 0x12000, scoped, tag = 'internal scratch']
  %s0 = inlined_call_operand.hbm [shape: f32[4,16,128], index: 0, kind: input, shape index: {}]
  %s1 = inlined_call_operand.hbm [shape: bf16[128,256], index: 1, kind: input, shape index: {}]
  %s2 = inlined_call_operand.hbm [shape: bf16[256,128], index: 2, kind: input, shape index: {}]
  %s3 = inlined_call_operand.hbm [shape: f32[4,16,128], index: 3, kind: output, shape index: {}]
  %s4 = sld [smem:[#allocation0]]
  $region57: #{tpu_custom_call.1} parent=0
    _
  %s6 = ssub.s32 1, %s4
  %s7 = scalar_select 0, %s6, %s4
  $region1: #{tpu_custom_call.1} parent=0
    #allocation2 [shape = 'u8[32768]{0}', space=vmem, size = 0x8000, scoped, tag = 'input window, operand 0']
    #allocation3 [shape = 's32[2]{0}', space=sflag, size = 0x8, scoped, tag = 'scoped memory for tpu_custom_call.1']
    #allocation4 [shape = 's32[2]{0}', space=sflag, size = 0x8, scoped, tag = 'scoped memory for tpu_custom_call.1']
    #allocation5 [shape = 'u8[65536]{0}', space=vmem, size = 0x10000, scoped, tag = 'input window, operand 1, single buffered']
    #allocation6 [shape = 's32[1]{0}', space=sflag, size = 0x4, scoped, tag = 'scoped memory for tpu_custom_call.1']
    #allocation7 [shape = 'u8[65536]{0}', space=vmem, size = 0x10000, scoped, tag = 'input window, operand 2, single buffered']
    #allocation8 [shape = 'u8[32768]{0}', space=vmem, size = 0x8000, scoped, tag = 'output window, operand 0']
    %8 = vsyncpa [#allocation3], 0
    %s9 = scalar_lea.sflag [#allocation3], 1
    %10 = vsyncpa %s9, 0
    %11 = vsyncpa [#allocation6], 0
    %12 = vsyncpa [#allocation4], 0
    %s13 = scalar_lea.sflag [#allocation4], 1
    %14 = vsyncpa %s13, 0
    loop: start=0, step=1, limit=4
    $region2: #{tpu_custom_call.1} parent=1 // loop_pre_header
      _
    $region3: #{tpu_custom_call.1} parent=1 // loop_header
      %s16 = sphi 0, %s20
      %p17 = scmp.ge.s32.totalorder %s16, 4
      %s26 = sphi 0, %s28
      %s29 = sphi 0, %s26
      %s30 = sphi 0, %s29
      %s46 = sphi 0, %s30
      %s50 = sphi 0, %s50
      %s52 = sphi 0, %s50
      %s53 = sphi 0, %s52
      %s67 = sphi 0, %s53
      %s71 = sphi 0, %s71
      %s73 = sphi 0, %s71
      %s74 = sphi 0, %s73
      %s88 = sphi 0, %s74
      %s94 = sphi 0, %s96
      %s97 = sphi 0, %s94
      %s98 = sphi 0, %s97
      %s114 = sphi 0, %s98
    $region4: #{tpu_custom_call.1} parent=1 // loop_header_branch
      %19 = sbr.rel (%p17) target = $region8
    $region5: #{tpu_custom_call.1} parent=1 // loop_body
      %s21 = ssub.s32 %s16, 1
      %s22 = ssub.s32 %s16, 2
      %s23 = sadd.s32 %s16, 1
      %s24 = ssub.s32 %s16, %s23
      %p25 = scmp.eq.s32.totalorder %s24, 0
      %s27 = sadd.s32 %s26, 1
      %s28 = scalar_select %p25, %s26, %s27
      %p31 = pneg %p25
      %p32 = scmp.eq.s32.totalorder %s16, 1
      %p33 = por %p31, %p32
      %p34 = scmp.ne.s32.totalorder %s26, %s29
      %p35 = scmp.eq.s32.totalorder %s16, 0
      %p36 = por %p34, %p35
      %p37 = scmp.ne.s32.totalorder %s26, %s29
      %p38 = scmp.eq.s32.totalorder %s21, 1
      %p39 = por %p37, %p38
      %p40 = scmp.ne.s32.totalorder %s29, %s30
      %p41 = scmp.eq.s32.totalorder %s21, 0
      %p42 = por %p40, %p41
      %p43 = scmp.ne.s32.totalorder %s29, %s30
      %p44 = scmp.eq.s32.totalorder %s22, 1
      %p45 = por %p43, %p44
      %p47 = scmp.ne.s32.totalorder %s30, %s46
      %p48 = scmp.eq.s32.totalorder %s22, 0
      %p49 = por %p47, %p48
      %s51 = sadd.s32 %s50, 1
      %p54 = scmp.eq.s32.totalorder %s16, 1
      %p55 = scmp.ne.s32.totalorder %s50, %s52
      %p56 = scmp.eq.s32.totalorder %s16, 0
      %p57 = por %p55, %p56
      %p58 = scmp.ne.s32.totalorder %s50, %s52
      %p59 = scmp.eq.s32.totalorder %s21, 1
      %p60 = por %p58, %p59
      %p61 = scmp.ne.s32.totalorder %s52, %s53
      %p62 = scmp.eq.s32.totalorder %s21, 0
      %p63 = por %p61, %p62
      %p64 = scmp.ne.s32.totalorder %s52, %s53
      %p65 = scmp.eq.s32.totalorder %s22, 1
      %p66 = por %p64, %p65
      %p68 = scmp.ne.s32.totalorder %s53, %s67
      %p69 = scmp.eq.s32.totalorder %s22, 0
      %p70 = por %p68, %p69
      %s72 = sadd.s32 %s71, 1
      %p75 = scmp.eq.s32.totalorder %s16, 1
      %p76 = scmp.ne.s32.totalorder %s71, %s73
      %p77 = scmp.eq.s32.totalorder %s16, 0
      %p78 = por %p76, %p77
      %p79 = scmp.ne.s32.totalorder %s71, %s73
      %p80 = scmp.eq.s32.totalorder %s21, 1
      %p81 = por %p79, %p80
      %p82 = scmp.ne.s32.totalorder %s73, %s74
      %p83 = scmp.eq.s32.totalorder %s21, 0
      %p84 = por %p82, %p83
      %p85 = scmp.ne.s32.totalorder %s73, %s74
      %p86 = scmp.eq.s32.totalorder %s22, 1
      %p87 = por %p85, %p86
      %p89 = scmp.ne.s32.totalorder %s74, %s88
      %p90 = scmp.eq.s32.totalorder %s22, 0
      %p91 = por %p89, %p90
      %s92 = ssub.s32 %s16, %s23
      %p93 = scmp.eq.s32.totalorder %s92, 0
      %s95 = sadd.s32 %s94, 1
      %s96 = scalar_select %p93, %s94, %s95
      %p99 = pneg %p93
      %p100 = scmp.eq.s32.totalorder %s16, 1
      %p101 = por %p99, %p100
      %p102 = scmp.ne.s32.totalorder %s94, %s97
      %p103 = scmp.eq.s32.totalorder %s16, 0
      %p104 = por %p102, %p103
      %p105 = scmp.ne.s32.totalorder %s94, %s97
      %p106 = scmp.eq.s32.totalorder %s21, 1
      %p107 = por %p105, %p106
      %p108 = scmp.ne.s32.totalorder %s97, %s98
      %p109 = scmp.eq.s32.totalorder %s21, 0
      %p110 = por %p108, %p109
      %p111 = scmp.ne.s32.totalorder %s97, %s98
      %p112 = scmp.eq.s32.totalorder %s22, 1
      %p113 = por %p111, %p112
      %p115 = scmp.ne.s32.totalorder %s98, %s114
      %p116 = scmp.eq.s32.totalorder %s22, 0
      %p117 = por %p115, %p116
      %p118 = scmp.le.s32.totalorder 1, %s16
      %p119 = scmp.lt.s32.totalorder %s16, 3
      %p120 = pnand %p118, %p119
      %p121 = pneg %p120
      // Predicated region
      $region9: #{tpu_custom_call.1} parent=5 // pred_check
        _
      $region10: #{tpu_custom_call.1} parent=5 // pred_check_branch
        %123 = sbr.rel (%p120) target = $region12
      $region11: #{tpu_custom_call.1} parent=5 // pred_region
        %s124 = ssub.s32 %s16, 1
        // Predicated region
        $region13: #{tpu_custom_call.1} parent=11 // pred_check
          %p125 = pneg %p63
        $region14: #{tpu_custom_call.1} parent=11 // pred_check_branch
          %127 = sbr.rel (%p125) target = $region16
        $region15: #{tpu_custom_call.1} parent=11 // pred_region
          %s129 = ssub.s32 2048, 2048
          %130 = vsyncadd [#allocation6], %s129
          %s131 = sshll.u32 [#allocation5], 4
          %s132 = int_to_ptr.vmem [resolvable:$true] %s131
          %137 = dma.hbm_to_vmem [thread:$0]  %s1, 2048, %s132, [#allocation6], 128, 128, 8
        $region16: #{tpu_custom_call.1} parent=11 // pred_fallthru
          _
        // Predicated region
        $region17: #{tpu_custom_call.1} parent=11 // pred_check
          %p138 = pneg %p84
        $region18: #{tpu_custom_call.1} parent=11 // pred_check_branch
          %140 = sbr.rel (%p138) target = $region20
        $region19: #{tpu_custom_call.1} parent=11 // pred_region
          %s142 = ssub.s32 2048, 2048
          %143 = vsyncadd [#allocation6], %s142
          %s144 = sshll.u32 [#allocation7], 4
          %s145 = int_to_ptr.vmem [resolvable:$true] %s144
          %150 = dma.hbm_to_vmem [thread:$0]  %s2, 2048, %s145, [#allocation6], 64, 64, 4
        $region20: #{tpu_custom_call.1} parent=11 // pred_fallthru
          _
      $region12: #{tpu_custom_call.1} parent=5 // pred_fallthru
        _
      %p151 = scmp.lt.s32.totalorder %s16, 2
      // Predicated region
      $region21: #{tpu_custom_call.1} parent=5 // pred_check
        %p152 = pneg %p151
      $region22: #{tpu_custom_call.1} parent=5 // pred_check_branch
        %154 = sbr.rel (%p152) target = $region24
      $region23: #{tpu_custom_call.1} parent=5 // pred_region
        // Predicated region
        $region25: #{tpu_custom_call.1} parent=23 // pred_check
          %p155 = pneg %p36
        $region26: #{tpu_custom_call.1} parent=23 // pred_check_branch
          %157 = sbr.rel (%p155) target = $region28
        $region27: #{tpu_custom_call.1} parent=23 // pred_region
          %s158 = sand.u32 %s26, 1
          %s159 = scalar_lea.sflag [#allocation3], %s158
          %s160 = sand.u32 %s26, 1
          %s161 = smul.addr %s160, 32
          %s162 = scalar_lea.vmem [#allocation2], %s161
          %s163 = smul.u32 2, %s16
          %s165 = ssub.s32 512, 512
          %166 = vsyncadd %s159, %s165
          %s167 = smul.addr %s163, 2
          %s168 = smul.addr %s167, 128
          %s169 = scalar_lea.hbm %s0, %s168
          %s170 = sshll.u32 %s162, 4
          %s171 = int_to_ptr.vmem [resolvable:$true] %s170
          %176 = dma.hbm_to_vmem [thread:$0]  %s169, 512, %s171, %s159, 128, 128, 8
        $region28: #{tpu_custom_call.1} parent=23 // pred_fallthru
          _
      $region24: #{tpu_custom_call.1} parent=5 // pred_fallthru
        _
      %p177 = scmp.le.s32.totalorder 1, %s16
      %p178 = scmp.lt.s32.totalorder %s16, 3
      %p179 = pnand %p177, %p178
      %p180 = pneg %p179
      // Predicated region
      $region29: #{tpu_custom_call.1} parent=5 // pred_check
        _
      $region30: #{tpu_custom_call.1} parent=5 // pred_check_branch
        %182 = sbr.rel (%p179) target = $region32
      $region31: #{tpu_custom_call.1} parent=5 // pred_region
        %s183 = ssub.s32 %s16, 1
        %s184 = sand.u32 %s29, 1
        %s185 = scalar_lea.sflag [#allocation3], %s184
        %s186 = sand.u32 %s29, 1
        %s187 = smul.addr %s186, 32
        %s188 = scalar_lea.vmem [#allocation2], %s187
        // Predicated region
        $region33: #{tpu_custom_call.1} parent=31 // pred_check
          %p189 = pneg %p42
        $region34: #{tpu_custom_call.1} parent=31 // pred_check_branch
          %191 = sbr.rel (%p189) target = $region36
        $region35: #{tpu_custom_call.1} parent=31 // pred_region
          %192 = dma.done %s185, 512
        $region36: #{tpu_custom_call.1} parent=31 // pred_fallthru
          _
        // Predicated region
        $region37: #{tpu_custom_call.1} parent=31 // pred_check
          %p193 = pneg %p63
        $region38: #{tpu_custom_call.1} parent=31 // pred_check_branch
          %195 = sbr.rel (%p193) target = $region40
        $region39: #{tpu_custom_call.1} parent=31 // pred_region
          %196 = dma.done [#allocation6], 2048
        $region40: #{tpu_custom_call.1} parent=31 // pred_fallthru
          _
        // Predicated region
        $region41: #{tpu_custom_call.1} parent=31 // pred_check
          %p197 = pneg %p84
        $region42: #{tpu_custom_call.1} parent=31 // pred_check_branch
          %199 = sbr.rel (%p197) target = $region44
        $region43: #{tpu_custom_call.1} parent=31 // pred_region
          %200 = dma.done [#allocation6], 2048
        $region44: #{tpu_custom_call.1} parent=31 // pred_fallthru
          _
        %s201 = sand.u32 %s29, 1
        %s202 = scalar_lea.sflag [#allocation3], %s201
        %s203 = sand.u32 %s29, 1
        %s204 = smul.addr %s203, 32
        %s205 = scalar_lea.vmem [#allocation2], %s204
        %p206 = pneg %p42
        %p207 = pneg %p39
        %p208 = pneg %p63
        %p209 = pneg %p60
        %p210 = pneg %p84
        %p211 = pneg %p81
        %p212 = pneg %p110
        %p213 = pneg %p107
        %s214 = sand.u32 %s97, 1
        %s215 = scalar_lea.sflag [#allocation4], %s214
        %s216 = sand.u32 %s97, 1
        %s217 = smul.addr %s216, 32
        %s218 = scalar_lea.vmem [#allocation8], %s217
        %s219 = smul.u32 2, %s21
        %s220 = smul.u32 2, %s21
        %v222 = vld [vmem:[%s188] sm:$0xff]
        %v223 = vld [vmem:[%s188 + $0x8] sm:$0xff]
        %v224 = vld [vmem:[%s188 + $0x10] sm:$0xff]
        %v225 = vld [vmem:[%s188 + $0x18] sm:$0xff]
        %v226 = vpack.c.bf16 %v223, %v222
        %v227 = vpack.c.bf16 %v225, %v224
        %v228 = vld [vmem:[#allocation5] sm:$0xff]
        %v229 = vld [vmem:[#allocation5 + $0x8] sm:$0xff]
        %v230 = vld [vmem:[#allocation5 + $0x10] sm:$0xff]
        %v231 = vld [vmem:[#allocation5 + $0x18] sm:$0xff]
        %v232 = vld [vmem:[#allocation5 + $0x20] sm:$0xff]
        %v233 = vld [vmem:[#allocation5 + $0x28] sm:$0xff]
        %v234 = vld [vmem:[#allocation5 + $0x30] sm:$0xff]
        %v235 = vld [vmem:[#allocation5 + $0x38] sm:$0xff]
        %v236 = vld [vmem:[#allocation5 + $0x40] sm:$0xff]
        %v237 = vld [vmem:[#allocation5 + $0x48] sm:$0xff]
        %v238 = vld [vmem:[#allocation5 + $0x50] sm:$0xff]
        %v239 = vld [vmem:[#allocation5 + $0x58] sm:$0xff]
        %v240 = vld [vmem:[#allocation5 + $0x60] sm:$0xff]
        %v241 = vld [vmem:[#allocation5 + $0x68] sm:$0xff]
        %v242 = vld [vmem:[#allocation5 + $0x70] sm:$0xff]
        %v243 = vld [vmem:[#allocation5 + $0x78] sm:$0xff]
        %v260 = vunpack.c.l.b16 %v228
        %v261 = vunpack.c.h.b16 %v228
        %v262 = vunpack.c.l.b16 %v229
        %v263 = vunpack.c.h.b16 %v229
        %v264 = vunpack.c.l.b16 %v230
        %v265 = vunpack.c.h.b16 %v230
        %v266 = vunpack.c.l.b16 %v231
        %v267 = vunpack.c.h.b16 %v231
        %v268 = vunpack.c.l.b16 %v232
        %v269 = vunpack.c.h.b16 %v232
        %v270 = vunpack.c.l.b16 %v233
        %v271 = vunpack.c.h.b16 %v233
        %v272 = vunpack.c.l.b16 %v234
        %v273 = vunpack.c.h.b16 %v234
        %v274 = vunpack.c.l.b16 %v235
        %v275 = vunpack.c.h.b16 %v235
        %v276 = vunpack.c.l.b16 %v236
        %v277 = vunpack.c.h.b16 %v236
        %v278 = vunpack.c.l.b16 %v237
        %v279 = vunpack.c.h.b16 %v237
        %v280 = vunpack.c.l.b16 %v238
        %v281 = vunpack.c.h.b16 %v238
        %v282 = vunpack.c.l.b16 %v239
        %v283 = vunpack.c.h.b16 %v239
        %v284 = vunpack.c.l.b16 %v240
        %v285 = vunpack.c.h.b16 %v240
        %v286 = vunpack.c.l.b16 %v241
        %v287 = vunpack.c.h.b16 %v241
        %v288 = vunpack.c.l.b16 %v242
        %v289 = vunpack.c.h.b16 %v242
        %v290 = vunpack.c.l.b16 %v243
        %v291 = vunpack.c.h.b16 %v243
        %v292 = vpack.c.b16 %v262, %v260
        %v293 = vpack.c.b16 %v263, %v261
        %v294 = vpack.c.b16 %v266, %v264
        %v295 = vpack.c.b16 %v267, %v265
        %v296 = vpack.c.b16 %v270, %v268
        %v297 = vpack.c.b16 %v271, %v269
        %v298 = vpack.c.b16 %v274, %v272
        %v299 = vpack.c.b16 %v275, %v273
        %v300 = vpack.c.b16 %v278, %v276
        %v301 = vpack.c.b16 %v279, %v277
        %v302 = vpack.c.b16 %v282, %v280
        %v303 = vpack.c.b16 %v283, %v281
        %v304 = vpack.c.b16 %v286, %v284
        %v305 = vpack.c.b16 %v287, %v285
        %v306 = vpack.c.b16 %v290, %v288
        %v307 = vpack.c.b16 %v291, %v289
        %324 = vmatprep.subr.bf16.mxu0 %v293
        %325 = vmatpush1.bf16.msra.mxu0 %v292
        %326 = vmatprep.subr.bf16.mxu0 %v295
        %327 = vmatpush1.bf16.msra.mxu0 %v294
        %328 = vmatprep.subr.bf16.mxu0 %v297
        %329 = vmatpush1.bf16.msra.mxu0 %v296
        %330 = vmatprep.subr.bf16.mxu0 %v299
        %331 = vmatpush1.bf16.msra.mxu0 %v298
        %332 = vmatprep.subr.bf16.mxu0 %v301
        %333 = vmatpush1.bf16.msra.mxu0 %v300
        %334 = vmatprep.subr.bf16.mxu0 %v303
        %335 = vmatpush1.bf16.msra.mxu0 %v302
        %336 = vmatprep.subr.bf16.mxu0 %v305
        %337 = vmatpush1.bf16.msra.mxu0 %v304
        %338 = vmatprep.subr.bf16.mxu0 %v307
        %339 = vmatpush1.bf16.msra.mxu0 %v306
        %340 = vmatprep.subr.bf16.mxu0 0
        %341 = vmatpush1.bf16.msra.mxu0 0
        %342 = vmatprep.subr.bf16.mxu0 0
        %343 = vmatpush1.bf16.msra.mxu0 0
        %344 = vmatprep.subr.bf16.mxu0 0
        %345 = vmatpush1.bf16.msra.mxu0 0
        %346 = vmatprep.subr.bf16.mxu0 0
        %347 = vmatpush1.bf16.msra.mxu0 0
        %348 = vmatprep.subr.bf16.mxu0 0
        %349 = vmatpush1.bf16.msra.mxu0 0
        %350 = vmatprep.subr.bf16.mxu0 0
        %351 = vmatpush1.bf16.msra.mxu0 0
        %352 = vmatprep.subr.bf16.mxu0 0
        %353 = vmatpush1.bf16.msra.mxu0 0
        %354 = vmatprep.subr.bf16.mxu0 0
        %355 = vmatpush1.bf16.msra.mxu0 0
        %356 = vmatprep.mubr.bf16.mxu0 0
        %357 = vmatmul.mubr.bf16.gmra.mrb[0].mxu0 %v226
        %v358 = vpop.f32.mrb[0].mxu0
        %v359 = vadd.f32 0.0, %v358
        %v360 = vpop.f32.mrb[0].mxu0
        %v361 = vadd.f32 0.0, %v360
        %v362 = vpop.f32.mrb[0].mxu0
        %v363 = vadd.f32 0.0, %v362
        %v364 = vpop.f32.mrb[0].mxu0
        %v365 = vadd.f32 0.0, %v364
        %366 = vmatprep.mubr.bf16.mxu0 0
        %367 = vmatmul.mubr.bf16.gmra.mrb[0].mxu0 %v227
        %v368 = vpop.f32.mrb[0].mxu0
        %v369 = vadd.f32 0.0, %v368
        %v370 = vpop.f32.mrb[0].mxu0
        %v371 = vadd.f32 0.0, %v370
        %v372 = vpop.f32.mrb[0].mxu0
        %v373 = vadd.f32 0.0, %v372
        %v374 = vpop.f32.mrb[0].mxu0
        %v375 = vadd.f32 0.0, %v374
        %376 = vdwg.mxu0
        %v377 = vmax.f32 %v359, %v363
        %v378 = vrot.slane %v377, 4
        %v379 = vmax.f32 %v377, %v378
        %v380 = vrot.slane %v379, 2
        %v381 = vmax.f32 %v379, %v380
        %v382 = vrot.slane %v381, 1
        %v383 = vmax.f32 %v381, %v382
        %v384 = vmax.f32 %v361, %v365
        %v385 = vrot.slane %v384, 4
        %v386 = vmax.f32 %v384, %v385
        %v387 = vrot.slane %v386, 2
        %v388 = vmax.f32 %v386, %v387
        %v389 = vrot.slane %v388, 1
        %v390 = vmax.f32 %v388, %v389
        %v391 = vmax.f32 %v369, %v373
        %v392 = vrot.slane %v391, 4
        %v393 = vmax.f32 %v391, %v392
        %v394 = vrot.slane %v393, 2
        %v395 = vmax.f32 %v393, %v394
        %v396 = vrot.slane %v395, 1
        %v397 = vmax.f32 %v395, %v396
        %v398 = vmax.f32 %v371, %v375
        %v399 = vrot.slane %v398, 4
        %v400 = vmax.f32 %v398, %v399
        %v401 = vrot.slane %v400, 2
        %v402 = vmax.f32 %v400, %v401
        %v403 = vrot.slane %v402, 1
        %v404 = vmax.f32 %v402, %v403
        %v405 = vsub.f32 %v359, %v383
        %v406 = vsub.f32 %v361, %v390
        %v407 = vsub.f32 %v363, %v383
        %v408 = vsub.f32 %v365, %v390
        %v409 = vsub.f32 %v369, %v397
        %v410 = vsub.f32 %v371, %v404
        %v411 = vsub.f32 %v373, %v397
        %v412 = vsub.f32 %v375, %v404
        %v413 = vmul.f32 %v405, 1.442695
        %v414 = vpow.pop %v413
        %v415 = vmul.f32 %v406, 1.442695
        %v416 = vpow.pop %v415
        %v417 = vmul.f32 %v407, 1.442695
        %v418 = vpow.pop %v417
        %v419 = vmul.f32 %v408, 1.442695
        %v420 = vpow.pop %v419
        %v421 = vmul.f32 %v409, 1.442695
        %v422 = vpow.pop %v421
        %v423 = vmul.f32 %v410, 1.442695
        %v424 = vpow.pop %v423
        %v425 = vmul.f32 %v411, 1.442695
        %v426 = vpow.pop %v425
        %v427 = vmul.f32 %v412, 1.442695
        %v428 = vpow.pop %v427
        %v429 = vadd.f32 %v414, %v418
        %v430 = vrot.slane %v429, 4
        %v431 = vadd.f32 %v429, %v430
        %v432 = vrot.slane %v431, 2
        %v433 = vadd.f32 %v431, %v432
        %v434 = vrot.slane %v433, 1
        %v435 = vadd.f32 %v433, %v434
        %v436 = vadd.f32 %v416, %v420
        %v437 = vrot.slane %v436, 4
        %v438 = vadd.f32 %v436, %v437
        %v439 = vrot.slane %v438, 2
        %v440 = vadd.f32 %v438, %v439
        %v441 = vrot.slane %v440, 1
        %v442 = vadd.f32 %v440, %v441
        %v443 = vadd.f32 %v422, %v426
        %v444 = vrot.slane %v443, 4
        %v445 = vadd.f32 %v443, %v444
        %v446 = vrot.slane %v445, 2
        %v447 = vadd.f32 %v445, %v446
        %v448 = vrot.slane %v447, 1
        %v449 = vadd.f32 %v447, %v448
        %v450 = vadd.f32 %v424, %v428
        %v451 = vrot.slane %v450, 4
        %v452 = vadd.f32 %v450, %v451
        %v453 = vrot.slane %v452, 2
        %v454 = vadd.f32 %v452, %v453
        %v455 = vrot.slane %v454, 1
        %v456 = vadd.f32 %v454, %v455
        %v457 = vrcp.pop %v435
        %v458 = vrcp.pop %v442
        %v459 = vrcp.pop %v449
        %v460 = vrcp.pop %v456
        %v461 = vmul.f32 %v414, %v457
        %v462 = vmul.f32 %v416, %v458
        %v463 = vmul.f32 %v418, %v457
        %v464 = vmul.f32 %v420, %v458
        %v465 = vmul.f32 %v422, %v459
        %v466 = vmul.f32 %v424, %v460
        %v467 = vmul.f32 %v426, %v459
        %v468 = vmul.f32 %v428, %v460
        %v469 = vpack.c.bf16 %v463, %v461
        %v470 = vpack.c.bf16 %v464, %v462
        %v471 = vpack.c.bf16 %v467, %v465
        %v472 = vpack.c.bf16 %v468, %v466
        %v473 = vld [vmem:[#allocation7] sm:$0xf]
        %v474 = vld [vmem:[#allocation7 + $0x4] sm:$0xf]
        %v475 = vld [vmem:[#allocation7 + $0x8] sm:$0xf]
        %v476 = vld [vmem:[#allocation7 + $0xc] sm:$0xf]
        %v477 = vld [vmem:[#allocation7 + $0x10] sm:$0xf]
        %v478 = vld [vmem:[#allocation7 + $0x14] sm:$0xf]
        %v479 = vld [vmem:[#allocation7 + $0x18] sm:$0xf]
        %v480 = vld [vmem:[#allocation7 + $0x1c] sm:$0xf]
        %v481 = vld [vmem:[#allocation7 + $0x20] sm:$0xf]
        %v482 = vld [vmem:[#allocation7 + $0x24] sm:$0xf]
        %v483 = vld [vmem:[#allocation7 + $0x28] sm:$0xf]
        %v484 = vld [vmem:[#allocation7 + $0x2c] sm:$0xf]
        %v485 = vld [vmem:[#allocation7 + $0x30] sm:$0xf]
        %v486 = vld [vmem:[#allocation7 + $0x34] sm:$0xf]
        %v487 = vld [vmem:[#allocation7 + $0x38] sm:$0xf]
        %v488 = vld [vmem:[#allocation7 + $0x3c] sm:$0xf]
        %v489 = vld [vmem:[#allocation7 + $0x40] sm:$0xf]
        %v490 = vld [vmem:[#allocation7 + $0x44] sm:$0xf]
        %v491 = vld [vmem:[#allocation7 + $0x48] sm:$0xf]
        %v492 = vld [vmem:[#allocation7 + $0x4c] sm:$0xf]
        %v493 = vld [vmem:[#allocation7 + $0x50] sm:$0xf]
        %v494 = vld [vmem:[#allocation7 + $0x54] sm:$0xf]
        %v495 = vld [vmem:[#allocation7 + $0x58] sm:$0xf]
        %v496 = vld [vmem:[#allocation7 + $0x5c] sm:$0xf]
        %v497 = vld [vmem:[#allocation7 + $0x60] sm:$0xf]
        %v498 = vld [vmem:[#allocation7 + $0x64] sm:$0xf]
        %v499 = vld [vmem:[#allocation7 + $0x68] sm:$0xf]
        %v500 = vld [vmem:[#allocation7 + $0x6c] sm:$0xf]
        %v501 = vld [vmem:[#allocation7 + $0x70] sm:$0xf]
        %v502 = vld [vmem:[#allocation7 + $0x74] sm:$0xf]
        %v503 = vld [vmem:[#allocation7 + $0x78] sm:$0xf]
        %v504 = vld [vmem:[#allocation7 + $0x7c] sm:$0xf]
        %v537 = vunpack.c.l.b16 %v473
        %v538 = vunpack.c.l.b16 %v474
        %v539 = vunpack.c.l.b16 %v475
        %v540 = vunpack.c.l.b16 %v476
        %v541 = vunpack.c.l.b16 %v477
        %v542 = vunpack.c.l.b16 %v478
        %v543 = vunpack.c.l.b16 %v479
        %v544 = vunpack.c.l.b16 %v480
        %v545 = vunpack.c.l.b16 %v481
        %v546 = vunpack.c.l.b16 %v482
        %v547 = vunpack.c.l.b16 %v483
        %v548 = vunpack.c.l.b16 %v484
        %v549 = vunpack.c.l.b16 %v485
        %v550 = vunpack.c.l.b16 %v486
        %v551 = vunpack.c.l.b16 %v487
        %v552 = vunpack.c.l.b16 %v488
        %v553 = vunpack.c.l.b16 %v489
        %v554 = vunpack.c.l.b16 %v490
        %v555 = vunpack.c.l.b16 %v491
        %v556 = vunpack.c.l.b16 %v492
        %v557 = vunpack.c.l.b16 %v493
        %v558 = vunpack.c.l.b16 %v494
        %v559 = vunpack.c.l.b16 %v495
        %v560 = vunpack.c.l.b16 %v496
        %v561 = vunpack.c.l.b16 %v497
        %v562 = vunpack.c.l.b16 %v498
        %v563 = vunpack.c.l.b16 %v499
        %v564 = vunpack.c.l.b16 %v500
        %v565 = vunpack.c.l.b16 %v501
        %v566 = vunpack.c.l.b16 %v502
        %v567 = vunpack.c.l.b16 %v503
        %v568 = vunpack.c.l.b16 %v504
        %v569 = vpack.c.b16 %v538, %v537
        %v570 = vpack.c.b16 %v540, %v539
        %v571 = vpack.c.b16 %v542, %v541
        %v572 = vpack.c.b16 %v544, %v543
        %v573 = vpack.c.b16 %v546, %v545
        %v574 = vpack.c.b16 %v548, %v547
        %v575 = vpack.c.b16 %v550, %v549
        %v576 = vpack.c.b16 %v552, %v551
        %v577 = vpack.c.b16 %v554, %v553
        %v578 = vpack.c.b16 %v556, %v555
        %v579 = vpack.c.b16 %v558, %v557
        %v580 = vpack.c.b16 %v560, %v559
        %v581 = vpack.c.b16 %v562, %v561
        %v582 = vpack.c.b16 %v564, %v563
        %v583 = vpack.c.b16 %v566, %v565
        %v584 = vpack.c.b16 %v568, %v567
        %601 = vmatprep.subr.bf16.mxu0 0
        %602 = vmatpush1.bf16.msra.mxu0 %v569
        %603 = vmatprep.subr.bf16.mxu0 0
        %604 = vmatpush1.bf16.msra.mxu0 %v570
        %605 = vmatprep.subr.bf16.mxu0 0
        %606 = vmatpush1.bf16.msra.mxu0 %v571
        %607 = vmatprep.subr.bf16.mxu0 0
        %608 = vmatpush1.bf16.msra.mxu0 %v572
        %609 = vmatprep.subr.bf16.mxu0 0
        %610 = vmatpush1.bf16.msra.mxu0 %v573
        %611 = vmatprep.subr.bf16.mxu0 0
        %612 = vmatpush1.bf16.msra.mxu0 %v574
        %613 = vmatprep.subr.bf16.mxu0 0
        %614 = vmatpush1.bf16.msra.mxu0 %v575
        %615 = vmatprep.subr.bf16.mxu0 0
        %616 = vmatpush1.bf16.msra.mxu0 %v576
        %617 = vmatprep.subr.bf16.mxu0 0
        %618 = vmatpush1.bf16.msra.mxu0 %v577
        %619 = vmatprep.subr.bf16.mxu0 0
        %620 = vmatpush1.bf16.msra.mxu0 %v578
        %621 = vmatprep.subr.bf16.mxu0 0
        %622 = vmatpush1.bf16.msra.mxu0 %v579
        %623 = vmatprep.subr.bf16.mxu0 0
        %624 = vmatpush1.bf16.msra.mxu0 %v580
        %625 = vmatprep.subr.bf16.mxu0 0
        %626 = vmatpush1.bf16.msra.mxu0 %v581
        %627 = vmatprep.subr.bf16.mxu0 0
        %628 = vmatpush1.bf16.msra.mxu0 %v582
        %629 = vmatprep.subr.bf16.mxu0 0
        %630 = vmatpush1.bf16.msra.mxu0 %v583
        %631 = vmatprep.subr.bf16.mxu0 0
        %632 = vmatpush1.bf16.msra.mxu0 %v584
        %633 = vmatprep.mubr.bf16.mxu0 %v470
        %634 = vmatmul.mubr.bf16.gmra.mrb[0].mxu0 %v469
        %v635 = vpop.f32.mrb[0].mxu0
        %v636 = vadd.f32 0.0, %v635
        %v637 = vpop.f32.mrb[0].mxu0
        %v638 = vpop.f32.mrb[0].mxu0
        %v639 = vadd.f32 0.0, %v638
        %v640 = vpop.f32.mrb[0].mxu0
        %641 = vmatprep.mubr.bf16.mxu0 %v472
        %642 = vmatmul.mubr.bf16.gmra.mrb[0].mxu0 %v471
        %v643 = vpop.f32.mrb[0].mxu0
        %v644 = vadd.f32 0.0, %v643
        %v645 = vpop.f32.mrb[0].mxu0
        %v646 = vpop.f32.mrb[0].mxu0
        %v647 = vadd.f32 0.0, %v646
        %v648 = vpop.f32.mrb[0].mxu0
        %649 = vdwg.mxu0
        %650 = vst [vmem:[%s218] sm:$0xff] %v636
        %651 = vst [vmem:[%s218 + $0x8] sm:$0xff] %v639
        %652 = vst [vmem:[%s218 + $0x10] sm:$0xff] %v644
        %653 = vst [vmem:[%s218 + $0x18] sm:$0xff] %v647
        %s654 = sand.u32 %s97, 1
        %s655 = scalar_lea.sflag [#allocation4], %s654
        %s656 = sand.u32 %s97, 1
        %s657 = smul.addr %s656, 32
        %s658 = scalar_lea.vmem [#allocation8], %s657
        // Predicated region
        $region45: #{tpu_custom_call.1} parent=31 // pred_check
          %p659 = pneg %p107
        $region46: #{tpu_custom_call.1} parent=31 // pred_check_branch
          %661 = sbr.rel (%p659) target = $region48
        $region47: #{tpu_custom_call.1} parent=31 // pred_region
          %s662 = smul.u32 2, %s21
          %s664 = ssub.s32 512, 512
          %665 = vsyncadd %s655, %s664
          %s666 = smul.addr %s662, 2
          %s667 = smul.addr %s666, 128
          %s668 = scalar_lea.hbm %s3, %s667
          %s669 = sshll.u32 %s658, 4
          %s670 = int_to_ptr.vmem [resolvable:$true] %s669
          %675 = dma.vmem_to_hbm [thread:$0]  %s670, 512, %s668, %s655, 128, 128, 8
        $region48: #{tpu_custom_call.1} parent=31 // pred_fallthru
          _
      $region32: #{tpu_custom_call.1} parent=5 // pred_fallthru
        _
      %p676 = scmp.le.s32.totalorder 2, %s16
      // Predicated region
      $region49: #{tpu_custom_call.1} parent=5 // pred_check
        %p677 = pneg %p676
      $region50: #{tpu_custom_call.1} parent=5 // pred_check_branch
        %679 = sbr.rel (%p677) target = $region52
      $region51: #{tpu_custom_call.1} parent=5 // pred_region
        %s680 = ssub.s32 %s16, 2
        // Predicated region
        $region53: #{tpu_custom_call.1} parent=51 // pred_check
          %p681 = pneg %p113
        $region54: #{tpu_custom_call.1} parent=51 // pred_check_branch
          %683 = sbr.rel (%p681) target = $region56
        $region55: #{tpu_custom_call.1} parent=51 // pred_region
          %s684 = sand.u32 %s98, 1
          %s685 = scalar_lea.sflag [#allocation4], %s684
          %s686 = sand.u32 %s98, 1
          %s687 = smul.addr %s686, 32
          %s688 = scalar_lea.vmem [#allocation8], %s687
          %689 = dma.done %s685, 512
        $region56: #{tpu_custom_call.1} parent=51 // pred_fallthru
          _
      $region52: #{tpu_custom_call.1} parent=5 // pred_fallthru
        _
    $region6: #{tpu_custom_call.1} parent=1 // loop_footer
      %s20 = sadd.s32 1, %s16
    $region7: #{tpu_custom_call.1} parent=1 // loop_footer_branch
      %15 = sbr.rel target = $region3
    $region8: #{tpu_custom_call.1} parent=1 // loop_exit
      _
    %690 = vsyncpa [#allocation3], 1
    %s691 = scalar_lea.sflag [#allocation3], 1
    %692 = vsyncpa %s691, 1
    %693 = vsyncpa [#allocation6], 1
    %694 = vsyncpa [#allocation4], 1
    %s695 = scalar_lea.sflag [#allocation4], 1
    %696 = vsyncpa %s695, 1

</llo_original>
